<compile_context>
chip_gen: v6e
topology: v6e:2x2x1
jax: 0.10.0
libtpu: 0.0.40
codegen_flags: <defaults>
</compile_context>

<pallas_src>
import functools

import jax
import jax.numpy as jnp
from jax.experimental import pallas as pl
from jax.experimental.pallas import tpu as pltpu

_LANE = 128
_MAX_TILE_ROWS = 512  # 4 planes * 512 rows * 128 lanes * 4 B = 1 MiB per block


def _vfl_kernel(x_ref, out_ref, acc_ref, *, alpha, gamma, inv_div):
    """x_ref: (4, TILE_R, 128) f32 planes [pred, gt, label, valid].
    out_ref: (1, 1) f32 in SMEM. acc_ref: (1, 1) f32 SMEM running sum."""
    i = pl.program_id(0)

    @pl.when(i == 0)
    def _():
        acc_ref[0, 0] = jnp.float32(0.0)

    pred = x_ref[0]
    gt = x_ref[1]
    label = x_ref[2]
    valid = x_ref[3]

    sig = jax.nn.sigmoid(pred)
    sig_g = sig * sig if gamma == 2.0 else sig ** gamma
    weight = alpha * sig_g * (1.0 - label) + gt * label

    # Numerically stable BCE-with-logits: max(x,0) - x*y + log(1 + exp(-|x|))
    bce = (jnp.maximum(pred, 0.0) - pred * gt
           + jnp.log(1.0 + jnp.exp(-jnp.abs(pred))))

    acc_ref[0, 0] += jnp.sum(bce * weight * valid)

    @pl.when(i == pl.num_programs(0) - 1)
    def _():
        out_ref[0, 0] = acc_ref[0, 0] * inv_div


def varifocal_loss(pred_score, gt_score, label, alpha=0.75, gamma=2.0):
    """Pallas VarifocalLoss. pred_score/gt_score/label: (B, A, C) (any ndim>=2).
    Returns (bce_with_logits(pred, gt) * weight).mean(axis=1).sum() as f32 scalar."""
    assert pred_score.shape == gt_score.shape == label.shape
    assert pred_score.ndim >= 2
    divisor = pred_score.shape[1]  # .mean(1).sum() == total_sum / shape[1]

    p = pred_score.astype(jnp.float32).reshape(-1)
    g = gt_score.astype(jnp.float32).reshape(-1)
    lab = label.astype(jnp.float32).reshape(-1)
    t = p.shape[0]

    rows = -(-t // _LANE)                                # ceil(t / 128)
    tile_r = min(_MAX_TILE_ROWS, -(-rows // 8) * 8)      # multiple of 8, <= 512
    grid_n = -(-rows // tile_r)
    rows_pad = grid_n * tile_r
    pad = rows_pad * _LANE - t

    valid = jnp.ones((t,), jnp.float32)
    stacked = jnp.stack([
        jnp.pad(p, (0, pad)),
        jnp.pad(g, (0, pad)),
        jnp.pad(lab, (0, pad)),
        jnp.pad(valid, (0, pad)),
    ]).reshape(4, rows_pad, _LANE)

    kernel = functools.partial(
        _vfl_kernel, alpha=float(alpha), gamma=float(gamma),
        inv_div=float(1.0 / divisor))

    out = pl.pallas_call(
        kernel,
        out_shape=jax.ShapeDtypeStruct((1, 1), jnp.float32),
        grid=(grid_n,),
        in_specs=[pl.BlockSpec((4, tile_r, _LANE), lambda i: (0, i, 0))],
        out_specs=pl.BlockSpec(memory_space=pltpu.MemorySpace.SMEM),
        scratch_shapes=[pltpu.SMEM((1, 1), jnp.float32)],
        compiler_params=pltpu.CompilerParams(
            dimension_semantics=("arbitrary",)),
    )(stacked)
    return out[0, 0]


def _reference(pred_score, gt_score, label, alpha=0.75, gamma=2.0):
    p = pred_score.astype(jnp.float32)
    g = gt_score.astype(jnp.float32)
    lab = label.astype(jnp.float32)
    weight = alpha * jax.nn.sigmoid(p) ** gamma * (1.0 - lab) + g * lab
    bce = jnp.maximum(p, 0.0) - p * g + jnp.log1p(jnp.exp(-jnp.abs(p)))
    return jnp.sum(jnp.mean(bce * weight, axis=1))


if __name__ == "__main__":
    key = jax.random.PRNGKey(0)
    B, A, C = 2, 8, 32  # batch, anchors, classes

    k1, k2, k3 = jax.random.split(key, 3)
    pred_score = jax.random.normal(k1, (B, A, C), jnp.float32) * 2.0   # logits
    label = (jax.random.uniform(k2, (B, A, C)) > 0.9).astype(jnp.float32)
    gt_score = jax.random.uniform(k3, (B, A, C), jnp.float32) * label  # IoU-style targets

    out = varifocal_loss(pred_score, gt_score, label)
    jax.block_until_ready(out)

    ref = _reference(pred_score, gt_score, label)
    assert jnp.allclose(out, ref, rtol=1e-5, atol=1e-6), (out, ref)

    print("KERNEL_OK")
</pallas_src>

<mosaic_0001>
module attributes {stable_mosaic.version = 11 : i64} {
  func.func @_vfl_kernel(%arg0: i32, %arg1: memref<4x8x128xf32, #tpu.memory_space<vmem>>, %arg2: memref<1x1xf32, #tpu.memory_space<smem>>, %arg3: memref<1x1xf32, #tpu.memory_space<smem>>) attributes {dimension_semantics = [#tpu.dimension_semantics<arbitrary>], iteration_bounds = array<i64: 1>, scalar_prefetch = 0 : i64, scratch_operands = 1 : i64, tpu.core_type = #tpu.core_type<tc>, window_params = [{transform_indices = @transform_0, window_bounds = array<i64: 4, 8, 128>}, {transform_indices = @transform_1, window_bounds = array<i64: 1, 1>}]} {
    %c0_i32 = arith.constant 0 : i32
    %0 = arith.cmpi eq, %arg0, %c0_i32 : i32
    %1 = arith.extui %0 : i1 to i32
    %c0_i32_0 = arith.constant 0 : i32
    %2 = arith.cmpi ne, %1, %c0_i32_0 : i32
    scf.if %2 {
      %cst_21 = arith.constant 0.000000e+00 : f32
      %c0_22 = arith.constant 0 : index
      %c0_23 = arith.constant 0 : index
      %48 = memref.load %arg3[%c0_22, %c0_23] : memref<1x1xf32, #tpu.memory_space<smem>>
      memref.store %cst_21, %arg3[%c0_22, %c0_23] : memref<1x1xf32, #tpu.memory_space<smem>>
    } else {
    }
    %c0 = arith.constant 0 : index
    %c0_1 = arith.constant 0 : index
    %c0_2 = arith.constant 0 : index
    %3 = vector.load %arg1[%c0, %c0_1, %c0_2] : memref<4x8x128xf32, #tpu.memory_space<vmem>>, vector<1x8x128xf32>
    %4 = vector.shape_cast %3 : vector<1x8x128xf32> to vector<8x128xf32>
    %c1 = arith.constant 1 : index
    %c0_3 = arith.constant 0 : index
    %c0_4 = arith.constant 0 : index
    %5 = vector.load %arg1[%c1, %c0_3, %c0_4] : memref<4x8x128xf32, #tpu.memory_space<vmem>>, vector<1x8x128xf32>
    %6 = vector.shape_cast %5 : vector<1x8x128xf32> to vector<8x128xf32>
    %c2 = arith.constant 2 : index
    %c0_5 = arith.constant 0 : index
    %c0_6 = arith.constant 0 : index
    %7 = vector.load %arg1[%c2, %c0_5, %c0_6] : memref<4x8x128xf32, #tpu.memory_space<vmem>>, vector<1x8x128xf32>
    %8 = vector.shape_cast %7 : vector<1x8x128xf32> to vector<8x128xf32>
    %c3 = arith.constant 3 : index
    %c0_7 = arith.constant 0 : index
    %c0_8 = arith.constant 0 : index
    %9 = vector.load %arg1[%c3, %c0_7, %c0_8] : memref<4x8x128xf32, #tpu.memory_space<vmem>>, vector<1x8x128xf32>
    %10 = vector.shape_cast %9 : vector<1x8x128xf32> to vector<8x128xf32>
    %11 = arith.negf %4 : vector<8x128xf32>
    %12 = math.exp %11 : vector<8x128xf32>
    %cst = arith.constant 1.000000e+00 : f32
    %13 = vector.broadcast %cst : f32 to vector<8x128xf32>
    %14 = arith.addf %13, %12 : vector<8x128xf32>
    %15 = arith.divf %13, %14 : vector<8x128xf32>
    %16 = arith.mulf %15, %15 : vector<8x128xf32>
    %cst_9 = arith.constant 7.500000e-01 : f32
    %17 = vector.broadcast %cst_9 : f32 to vector<8x128xf32>
    %18 = arith.mulf %17, %16 : vector<8x128xf32>
    %cst_10 = arith.constant 1.000000e+00 : f32
    %19 = vector.broadcast %cst_10 : f32 to vector<8x128xf32>
    %20 = arith.subf %19, %8 : vector<8x128xf32>
    %21 = arith.mulf %18, %20 : vector<8x128xf32>
    %22 = arith.mulf %6, %8 : vector<8x128xf32>
    %23 = arith.addf %21, %22 : vector<8x128xf32>
    %cst_11 = arith.constant 0.000000e+00 : f32
    %24 = vector.broadcast %cst_11 : f32 to vector<8x128xf32>
    %25 = arith.maximumf %4, %24 : vector<8x128xf32>
    %26 = arith.mulf %4, %6 : vector<8x128xf32>
    %27 = arith.subf %25, %26 : vector<8x128xf32>
    %28 = math.absf %4 : vector<8x128xf32>
    %cst_12 = arith.constant 0.000000e+00 : f32
    %29 = vector.broadcast %cst_12 : f32 to vector<8x128xf32>
    %30 = arith.subf %29, %28 : vector<8x128xf32>
    %31 = math.exp %30 : vector<8x128xf32>
    %cst_13 = arith.constant 1.000000e+00 : f32
    %32 = vector.broadcast %cst_13 : f32 to vector<8x128xf32>
    %33 = arith.addf %32, %31 : vector<8x128xf32>
    %34 = math.log %33 : vector<8x128xf32>
    %35 = arith.addf %27, %34 : vector<8x128xf32>
    %c0_14 = arith.constant 0 : index
    %c0_15 = arith.constant 0 : index
    %36 = memref.load %arg3[%c0_14, %c0_15] : memref<1x1xf32, #tpu.memory_space<smem>>
    %37 = arith.mulf %35, %23 : vector<8x128xf32>
    %38 = arith.mulf %37, %10 : vector<8x128xf32>
    %39 = vector.shape_cast %38 : vector<8x128xf32> to vector<1x8x128xf32>
    %cst_16 = arith.constant dense<0.000000e+00> : vector<1xf32>
    %40 = vector.multi_reduction <add>, %39, %cst_16 [1, 2] : vector<1x8x128xf32> to vector<1xf32>
    %41 = vector.shape_cast %40 : vector<1xf32> to vector<1x1x1xf32>
    %42 = vector.extract %41[0, 0, 0] : f32 from vector<1x1x1xf32>
    %43 = arith.addf %36, %42 : f32
    %c0_17 = arith.constant 0 : index
    %c0_18 = arith.constant 0 : index
    %44 = memref.load %arg3[%c0_17, %c0_18] : memref<1x1xf32, #tpu.memory_space<smem>>
    memref.store %43, %arg3[%c0_17, %c0_18] : memref<1x1xf32, #tpu.memory_space<smem>>
    %c0_i32_19 = arith.constant 0 : i32
    %45 = arith.cmpi eq, %arg0, %c0_i32_19 : i32
    %46 = arith.extui %45 : i1 to i32
    %c0_i32_20 = arith.constant 0 : i32
    %47 = arith.cmpi ne, %46, %c0_i32_20 : i32
    scf.if %47 {
      %c0_21 = arith.constant 0 : index
      %c0_22 = arith.constant 0 : index
      %48 = memref.load %arg3[%c0_21, %c0_22] : memref<1x1xf32, #tpu.memory_space<smem>>
      %cst_23 = arith.constant 1.250000e-01 : f32
      %49 = arith.mulf %48, %cst_23 : f32
      %c0_24 = arith.constant 0 : index
      %c0_25 = arith.constant 0 : index
      %50 = memref.load %arg2[%c0_24, %c0_25] : memref<1x1xf32, #tpu.memory_space<smem>>
      memref.store %49, %arg2[%c0_24, %c0_25] : memref<1x1xf32, #tpu.memory_space<smem>>
    } else {
    }
    return
  }
  func.func @transform_0(%arg0: i32) -> (i32, i32, i32) {
    %c0_i32 = arith.constant 0 : i32
    %c0_i32_0 = arith.constant 0 : i32
    %c0_i32_1 = arith.constant 0 : i32
    return %c0_i32, %arg0, %c0_i32_0 : i32, i32, i32
  }
  func.func @transform_1(%arg0: i32) -> (i32, i32) {
    %c0_i32 = arith.constant 0 : i32
    %c0_i32_0 = arith.constant 0 : i32
    %c0_i32_1 = arith.constant 0 : i32
    return %c0_i32, %c0_i32_0 : i32, i32
  }
}

</mosaic_0001>

<llo_original>
// kernel: tpu_custom_call.1
$region0: #{tpu_custom_call.1}
  #allocation0 [shape = 'u32[]', space=smem, size = 0x4, offset = 0x4, fixed_abs, tag = 'smem constant byte address 0x4 - core index']
  #allocation1 [shape = 'u32[144,128]{1,0:T(1,128)}', space=vmem, size = 0x12000, scoped, tag = 'internal scratch']
  #allocation2 [shape = 'f32[1,1]{1,0:T(1,128)}', space=smem, size = 0x200, scoped, tag = 'scratch operand']
  %s0 = inlined_call_operand.hbm [shape: f32[4,8,128], index: 0, kind: input, shape index: {}]
  %s1 = inlined_call_operand.hbm [shape: f32[1,1], index: 1, kind: output, shape index: {}]
  %s2 = sld [smem:[#allocation0]]
  $region26: #{tpu_custom_call.1} parent=0
    _
  %s4 = ssub.s32 1, %s2
  %s5 = scalar_select 0, %s4, %s2
  $region1: #{tpu_custom_call.1} parent=0
    #allocation3 [shape = 'u8[16384]{0}', space=vmem, size = 0x4000, scoped, tag = 'input window, operand 0, single buffered']
    #allocation4 [shape = 's32[1]{0}', space=sflag, size = 0x4, scoped, tag = 'scoped memory for tpu_custom_call.1']
    #allocation5 [shape = 's32[1]{0}', space=sflag, size = 0x4, scoped, tag = 'scoped memory for tpu_custom_call.1']
    #allocation6 [shape = 'u8[512]{0}', space=smem, size = 0x200, scoped, tag = 'output window, operand 0, single buffered']
    %6 = vsyncpa [#allocation4], 0
    %7 = vsyncpa [#allocation5], 0
    // Predicated region
    $region2: #{tpu_custom_call.1} parent=1 // pred_check
      _
    $region3: #{tpu_custom_call.1} parent=1 // pred_check_branch
      %9 = sbr.rel (0) target = $region5
    $region4: #{tpu_custom_call.1} parent=1 // pred_region
      %s11 = ssub.s32 512, 512
      %12 = vsyncadd [#allocation4], %s11
      %s13 = sshll.u32 [#allocation3], 4
      %s14 = int_to_ptr.vmem [resolvable:$true] %s13
      %19 = dma.hbm_to_vmem [thread:$0]  %s0, 512, %s14, [#allocation4], 128, 128, 8
    $region5: #{tpu_custom_call.1} parent=1 // pred_fallthru
      _
    // Predicated region
    $region6: #{tpu_custom_call.1} parent=1 // pred_check
      _
    $region7: #{tpu_custom_call.1} parent=1 // pred_check_branch
      %21 = sbr.rel (0) target = $region9
    $region8: #{tpu_custom_call.1} parent=1 // pred_region
      %22 = dma.done [#allocation4], 512
    $region9: #{tpu_custom_call.1} parent=1 // pred_fallthru
      _
    %p23 = scmp.eq.s32.totalorder 0, 0
    // Predicated region
    $region10: #{tpu_custom_call.1} parent=1 // pred_check
      %p24 = pneg %p23
    $region11: #{tpu_custom_call.1} parent=1 // pred_check_branch
      %26 = sbr.rel (%p24) target = $region13
    $region12: #{tpu_custom_call.1} parent=1 // pred_region
      %s27 = scalar_lea.smem [#allocation2], 0
      %28 = sst [smem:[%s27]] 0.0
    $region13: #{tpu_custom_call.1} parent=1 // pred_fallthru
      _
    %v29 = vld [vmem:[#allocation3] sm:$0xff]
    %s30 = scalar_lea.vmem [#allocation3], 8
    %v31 = vld [vmem:[%s30] sm:$0xff]
    %s32 = scalar_lea.vmem [#allocation3], 16
    %v33 = vld [vmem:[%s32] sm:$0xff]
    %s34 = scalar_lea.vmem [#allocation3], 24
    %v35 = vld [vmem:[%s34] sm:$0xff]
    %v36 = vxor.u32 %v29, 2147483648
    %v37 = vmul.f32 %v36, 1.442695
    %v38 = vpow.pop %v37
    %v39 = vadd.f32 %v38, 1.0
    %v40 = vrcp.pop %v39
    %v41 = vmul.f32 1.0, %v40
    %v42 = vmul.f32 %v41, %v41
    %v43 = vmul.f32 %v42, 0.75
    %v44 = vsub.f32 1.0, %v33
    %v45 = vmul.f32 %v43, %v44
    %v46 = vmul.f32 %v31, %v33
    %v47 = vadd.f32 %v45, %v46
    %v48 = vmax.f32 %v29, 0.0
    %v49 = vmul.f32 %v29, %v31
    %v50 = vsub.f32 %v48, %v49
    %v51 = vand.u32 2147483647, %v29
    %v52 = vsub.f32 0.0, %v51
    %v53 = vmul.f32 %v52, 1.442695
    %v54 = vpow.pop %v53
    %v55 = vadd.f32 %v54, 1.0
    %v56 = vlog2.pop %v55
    %v57 = vmul.f32 %v56, 0.6931472
    %v58 = vadd.f32 %v50, %v57
    %s59 = sld [smem:[#allocation2]]
    %v60 = vmul.f32 %v58, %v47
    %v61 = vmul.f32 %v60, %v35
    %62 = vadd.xlane.f32.xlu0 %v61
    %v63 = vpop.xlane.xlu0 %62
    %v64 = vrot.slane %v63, 4
    %v65 = vadd.f32 %v63, %v64
    %v66 = vrot.slane %v65, 2
    %v67 = vadd.f32 %v65, %v66
    %v68 = vrot.slane %v67, 1
    %v69 = vadd.f32 %v67, %v68
    %s70 = vtos %v69
    %s71 = sadd.f32 %s59, %s70
    %s72 = scalar_lea.smem [#allocation2], 0
    %73 = sst [smem:[%s72]] %s71
    // Predicated region
    $region14: #{tpu_custom_call.1} parent=1 // pred_check
      %p74 = pneg %p23
    $region15: #{tpu_custom_call.1} parent=1 // pred_check_branch
      %76 = sbr.rel (%p74) target = $region17
    $region16: #{tpu_custom_call.1} parent=1 // pred_region
      %s77 = sld [smem:[#allocation2]]
      %s78 = smul.f32 %s77, 0.125
      %s79 = scalar_lea.smem [#allocation6], 0
      %80 = sst [smem:[%s79]] %s78
    $region17: #{tpu_custom_call.1} parent=1 // pred_fallthru
      _
    // Predicated region
    $region18: #{tpu_custom_call.1} parent=1 // pred_check
      _
    $region19: #{tpu_custom_call.1} parent=1 // pred_check_branch
      %82 = sbr.rel (0) target = $region21
    $region20: #{tpu_custom_call.1} parent=1 // pred_region
      %s84 = ssub.s32 16, 16
      %85 = vsyncadd [#allocation5], %s84
      %88 = dma.smem_to_hbm [#allocation6], 16, %s1, [#allocation5]
    $region21: #{tpu_custom_call.1} parent=1 // pred_fallthru
      _
    // Predicated region
    $region22: #{tpu_custom_call.1} parent=1 // pred_check
      _
    $region23: #{tpu_custom_call.1} parent=1 // pred_check_branch
      %90 = sbr.rel (0) target = $region25
    $region24: #{tpu_custom_call.1} parent=1 // pred_region
      %91 = dma.done [#allocation5], 16
    $region25: #{tpu_custom_call.1} parent=1 // pred_fallthru
      _
    %92 = sfence
    %93 = vsyncpa [#allocation4], 1
    %94 = vsyncpa [#allocation5], 1

</llo_original>
